<compile_context>
chip_gen: v5e
topology: v5e:2x2
jax: 0.10.0
libtpu: 0.0.40
codegen_flags: <defaults>
</compile_context>

<pallas_src>
import functools

import jax
import jax.numpy as jnp
import numpy as np
from jax import lax
from jax.experimental import pallas as pl
from jax.experimental.pallas import tpu as pltpu

BN_EPS = 1e-5


def _bn_conv3x3_relu_kernel(x_ref, a_ref, b_ref, w_ref, ml_ref, mr_ref, o_ref, *, width):
    """Per-image fused (folded-BN FMA) + 3x3 'same' conv (single matmul) + ReLU.

    x_ref : (Cin_p, H*W)     raw input image, spatial flattened into lanes
    a_ref : (Cin_p, 1)       per-channel BN scale  = gamma * rsqrt(var + eps)  (0 for pad ch)
    b_ref : (Cin_p, 1)       per-channel BN shift  = beta - mean * a           (0 for pad ch)
    w_ref : (Cout, 9*Cin_p)  conv weights, tap-major: [(ky*3+kx)*Cin_p + ci]
    ml_ref: (1, H*W)         0.0 where w == 0        (left-border mask, dx = -1 taps)
    mr_ref: (1, H*W)         0.0 where w == W - 1    (right-border mask, dx = +1 taps)
    o_ref : (Cout, H*W)      output image (lane-dense, unmasked stores)
    """
    c, hw = x_ref.shape

    # BatchNorm folded to a single per-channel FMA (stats hoisted to the wrapper).
    xn = x_ref[...] * a_ref[...] + b_ref[...]                    # (Cin_p, HW), VPU

    def tap(dy, dx):
        # Value of xn at (h+dy, w+dx), zero outside the image ('same' zero padding).
        # Row over/underflow lands in the zero-filled head/tail of the lane shift;
        # the remaining invalid corner/edge columns are killed by the column masks.
        s = dy * width + dx
        if s > 0:
            t = jnp.concatenate([xn[:, s:], jnp.zeros((c, s), xn.dtype)], axis=1)
        elif s < 0:
            t = jnp.concatenate([jnp.zeros((c, -s), xn.dtype), xn[:, :s]], axis=1)
        else:
            t = xn
        if dx == -1:
            t = t * ml_ref[...]
        elif dx == 1:
            t = t * mr_ref[...]
        return t

    # im2col: stack the 9 shifted taps (sublane-aligned, Cin_p = multiple of 8) and do a
    # single (Cout, 9*Cin_p) x (9*Cin_p, HW) MXU matmul instead of 9 tiny K=Cin matmuls.
    patches = jnp.concatenate(
        [tap(dy, dx) for dy in (-1, 0, 1) for dx in (-1, 0, 1)], axis=0)   # (9*Cin_p, HW)
    acc = jnp.dot(w_ref[...], patches, preferred_element_type=jnp.float32)  # (Cout, HW)

    # ReLU + dense store (last dim H*W is a multiple of 128 -> unmasked vst).
    o_ref[...] = jnp.maximum(acc, 0.0)


@jax.jit
def norm_conv2d_relu(x_nchw, w_oihw, gamma, beta):
    """Matches PyTorch NormConv2dReLU.forward (NCHW in, NCHW out), training-mode BN."""
    N, Cin, H, W = x_nchw.shape
    Cout = w_oihw.shape[0]
    HW = H * W
    Cin_p = ((Cin + 7) // 8) * 8          # pad channels to a full sublane tile

    x = x_nchw.astype(jnp.float32)

    # ---- BatchNorm batch statistics, hoisted (single pass, f32, biased variance) ----
    m = jnp.mean(x, axis=(0, 2, 3))
    ex2 = jnp.mean(x * x, axis=(0, 2, 3))
    var = ex2 - m * m
    a = gamma.astype(jnp.float32) * lax.rsqrt(var + BN_EPS)
    b = beta.astype(jnp.float32) - m * a

    # ---- layouts: NCHW-native spatial-in-lanes (reshapes only, no transposes of x) ----
    x_flat = jnp.pad(x.reshape(N, Cin, HW), ((0, 0), (0, Cin_p - Cin), (0, 0)))
    a2 = jnp.pad(a, (0, Cin_p - Cin)).reshape(Cin_p, 1)
    b2 = jnp.pad(b, (0, Cin_p - Cin)).reshape(Cin_p, 1)

    # Conv weights, tap-major: w2[co, (ky*3+kx)*Cin_p + ci] = w[co, ci, ky, kx].
    w2 = jnp.transpose(w_oihw.astype(jnp.float32), (0, 2, 3, 1))            # (Cout,3,3,Cin)
    w2 = jnp.pad(w2, ((0, 0), (0, 0), (0, 0), (0, Cin_p - Cin))).reshape(Cout, 9 * Cin_p)

    # Precomputed column-validity masks for the horizontal taps ('same' zero padding).
    col = jnp.arange(HW, dtype=jnp.int32) % W
    mask_l = (col != 0).astype(jnp.float32).reshape(1, HW)
    mask_r = (col != W - 1).astype(jnp.float32).reshape(1, HW)

    kernel = functools.partial(_bn_conv3x3_relu_kernel, width=W)
    out_flat = pl.pallas_call(
        kernel,
        out_shape=jax.ShapeDtypeStruct((N, Cout, HW), jnp.float32),
        grid=(N,),
        in_specs=[
            pl.BlockSpec((None, Cin_p, HW), lambda n: (n, 0, 0)),
            pl.BlockSpec((Cin_p, 1), lambda n: (0, 0)),
            pl.BlockSpec((Cin_p, 1), lambda n: (0, 0)),
            pl.BlockSpec((Cout, 9 * Cin_p), lambda n: (0, 0)),
            pl.BlockSpec((1, HW), lambda n: (0, 0)),
            pl.BlockSpec((1, HW), lambda n: (0, 0)),
        ],
        out_specs=pl.BlockSpec((None, Cout, HW), lambda n: (n, 0, 0)),
        compiler_params=pltpu.CompilerParams(
            dimension_semantics=("parallel",)),
    )(x_flat, a2, b2, w2, mask_l, mask_r)

    return out_flat.reshape(N, Cout, H, W)


def _reference(x_nchw, w_oihw, gamma, beta):
    """Pure-JAX reference mirroring the PyTorch module (training-mode BN)."""
    x = x_nchw.astype(jnp.float32)
    mean = jnp.mean(x, axis=(0, 2, 3), keepdims=True)
    var = jnp.mean((x - mean) ** 2, axis=(0, 2, 3), keepdims=True)
    xn = (x - mean) * lax.rsqrt(var + BN_EPS)
    xn = xn * gamma.reshape(1, -1, 1, 1) + beta.reshape(1, -1, 1, 1)
    y = lax.conv_general_dilated(
        xn, w_oihw.astype(jnp.float32),
        window_strides=(1, 1), padding="SAME",
        dimension_numbers=("NCHW", "OIHW", "NCHW"))
    return jnp.maximum(y, 0.0)


if __name__ == "__main__":
    # Small shapes consistent with the module: batch=2, in_channels=4, 16x16, out_channels=8.
    N, Cin, H, W, Cout = 2, 4, 16, 16, 8

    key = jax.random.PRNGKey(0)
    kx, kw, kg, kb = jax.random.split(key, 4)
    x = jax.random.normal(kx, (N, Cin, H, W), dtype=jnp.float32)
    w = jax.random.normal(kw, (Cout, Cin, 3, 3), dtype=jnp.float32) * 0.1
    gamma = 1.0 + 0.1 * jax.random.normal(kg, (Cin,), dtype=jnp.float32)
    beta = 0.1 * jax.random.normal(kb, (Cin,), dtype=jnp.float32)

    out = jax.block_until_ready(norm_conv2d_relu(x, w, gamma, beta))

    ref = _reference(x, w, gamma, beta)
    np.testing.assert_allclose(np.asarray(out), np.asarray(ref), rtol=1e-4, atol=1e-4)

    print("KERNEL_OK")
</pallas_src>

<mosaic_0001>
module attributes {stable_mosaic.version = 11 : i64} {
  func.func @_bn_conv3x3_relu_kernel(%arg0: i32, %arg1: memref<1x8x256xf32, #tpu.memory_space<vmem>>, %arg2: memref<8x1xf32, #tpu.memory_space<vmem>>, %arg3: memref<8x1xf32, #tpu.memory_space<vmem>>, %arg4: memref<8x72xf32, #tpu.memory_space<vmem>>, %arg5: memref<1x256xf32, #tpu.memory_space<vmem>>, %arg6: memref<1x256xf32, #tpu.memory_space<vmem>>, %arg7: memref<1x8x256xf32, #tpu.memory_space<vmem>>) attributes {dimension_semantics = [#tpu.dimension_semantics<parallel>], iteration_bounds = array<i64: 2>, scalar_prefetch = 0 : i64, scratch_operands = 0 : i64, tpu.core_type = #tpu.core_type<tc>, window_params = [{transform_indices = @transform_0, window_bounds = array<i64: 1, 8, 256>}, {pipeline_mode = #tpu.pipeline_mode<synchronous>, transform_indices = @transform_1, window_bounds = array<i64: 8, 1>}, {pipeline_mode = #tpu.pipeline_mode<synchronous>, transform_indices = @transform_2, window_bounds = array<i64: 8, 1>}, {pipeline_mode = #tpu.pipeline_mode<synchronous>, transform_indices = @transform_3, window_bounds = array<i64: 8, 72>}, {pipeline_mode = #tpu.pipeline_mode<synchronous>, transform_indices = @transform_4, window_bounds = array<i64: 1, 256>}, {pipeline_mode = #tpu.pipeline_mode<synchronous>, transform_indices = @transform_5, window_bounds = array<i64: 1, 256>}, {transform_indices = @transform_6, window_bounds = array<i64: 1, 8, 256>}]} {
    %c0 = arith.constant 0 : index
    %c0_0 = arith.constant 0 : index
    %c0_1 = arith.constant 0 : index
    %0 = vector.load %arg1[%c0, %c0_0, %c0_1] : memref<1x8x256xf32, #tpu.memory_space<vmem>>, vector<1x8x256xf32>
    %1 = vector.shape_cast %0 : vector<1x8x256xf32> to vector<8x256xf32>
    %c0_2 = arith.constant 0 : index
    %c0_3 = arith.constant 0 : index
    %2 = vector.load %arg2[%c0_2, %c0_3] : memref<8x1xf32, #tpu.memory_space<vmem>>, vector<8x1xf32>
    %3 = vector.broadcast %2 : vector<8x1xf32> to vector<8x256xf32>
    %4 = arith.mulf %1, %3 : vector<8x256xf32>
    %c0_4 = arith.constant 0 : index
    %c0_5 = arith.constant 0 : index
    %5 = vector.load %arg3[%c0_4, %c0_5] : memref<8x1xf32, #tpu.memory_space<vmem>>, vector<8x1xf32>
    %6 = vector.broadcast %5 : vector<8x1xf32> to vector<8x256xf32>
    %7 = arith.addf %4, %6 : vector<8x256xf32>
    %cst = arith.constant 0.000000e+00 : f32
    %8 = vector.broadcast %cst : f32 to vector<8x17xf32>
    %9 = vector.extract_strided_slice %7 {offsets = [0, 0], sizes = [8, 239], strides = [1, 1]} : vector<8x256xf32> to vector<8x239xf32>
    %10 = tpu.concatenate %8, %9 in 1 : vector<8x17xf32>, vector<8x239xf32> -> vector<8x256xf32>
    %c0_6 = arith.constant 0 : index
    %c0_7 = arith.constant 0 : index
    %11 = vector.load %arg5[%c0_6, %c0_7] : memref<1x256xf32, #tpu.memory_space<vmem>>, vector<1x256xf32>
    %12 = vector.broadcast %11 : vector<1x256xf32> to vector<8x256xf32>
    %13 = arith.mulf %10, %12 : vector<8x256xf32>
    %cst_8 = arith.constant 0.000000e+00 : f32
    %14 = vector.broadcast %cst_8 : f32 to vector<8x16xf32>
    %15 = vector.extract_strided_slice %7 {offsets = [0, 0], sizes = [8, 240], strides = [1, 1]} : vector<8x256xf32> to vector<8x240xf32>
    %16 = tpu.concatenate %14, %15 in 1 : vector<8x16xf32>, vector<8x240xf32> -> vector<8x256xf32>
    %cst_9 = arith.constant 0.000000e+00 : f32
    %17 = vector.broadcast %cst_9 : f32 to vector<8x15xf32>
    %18 = vector.extract_strided_slice %7 {offsets = [0, 0], sizes = [8, 241], strides = [1, 1]} : vector<8x256xf32> to vector<8x241xf32>
    %19 = tpu.concatenate %17, %18 in 1 : vector<8x15xf32>, vector<8x241xf32> -> vector<8x256xf32>
    %c0_10 = arith.constant 0 : index
    %c0_11 = arith.constant 0 : index
    %20 = vector.load %arg6[%c0_10, %c0_11] : memref<1x256xf32, #tpu.memory_space<vmem>>, vector<1x256xf32>
    %21 = vector.broadcast %20 : vector<1x256xf32> to vector<8x256xf32>
    %22 = arith.mulf %19, %21 : vector<8x256xf32>
    %cst_12 = arith.constant 0.000000e+00 : f32
    %23 = vector.broadcast %cst_12 : f32 to vector<8x1xf32>
    %24 = vector.extract_strided_slice %7 {offsets = [0, 0], sizes = [8, 255], strides = [1, 1]} : vector<8x256xf32> to vector<8x255xf32>
    %25 = tpu.concatenate %23, %24 in 1 : vector<8x1xf32>, vector<8x255xf32> -> vector<8x256xf32>
    %c0_13 = arith.constant 0 : index
    %c0_14 = arith.constant 0 : index
    %26 = vector.load %arg5[%c0_13, %c0_14] : memref<1x256xf32, #tpu.memory_space<vmem>>, vector<1x256xf32>
    %27 = vector.broadcast %26 : vector<1x256xf32> to vector<8x256xf32>
    %28 = arith.mulf %25, %27 : vector<8x256xf32>
    %29 = vector.extract_strided_slice %7 {offsets = [0, 1], sizes = [8, 255], strides = [1, 1]} : vector<8x256xf32> to vector<8x255xf32>
    %cst_15 = arith.constant 0.000000e+00 : f32
    %30 = vector.broadcast %cst_15 : f32 to vector<8x1xf32>
    %31 = tpu.concatenate %29, %30 in 1 : vector<8x255xf32>, vector<8x1xf32> -> vector<8x256xf32>
    %c0_16 = arith.constant 0 : index
    %c0_17 = arith.constant 0 : index
    %32 = vector.load %arg6[%c0_16, %c0_17] : memref<1x256xf32, #tpu.memory_space<vmem>>, vector<1x256xf32>
    %33 = vector.broadcast %32 : vector<1x256xf32> to vector<8x256xf32>
    %34 = arith.mulf %31, %33 : vector<8x256xf32>
    %35 = vector.extract_strided_slice %7 {offsets = [0, 15], sizes = [8, 241], strides = [1, 1]} : vector<8x256xf32> to vector<8x241xf32>
    %cst_18 = arith.constant 0.000000e+00 : f32
    %36 = vector.broadcast %cst_18 : f32 to vector<8x15xf32>
    %37 = tpu.concatenate %35, %36 in 1 : vector<8x241xf32>, vector<8x15xf32> -> vector<8x256xf32>
    %c0_19 = arith.constant 0 : index
    %c0_20 = arith.constant 0 : index
    %38 = vector.load %arg5[%c0_19, %c0_20] : memref<1x256xf32, #tpu.memory_space<vmem>>, vector<1x256xf32>
    %39 = vector.broadcast %38 : vector<1x256xf32> to vector<8x256xf32>
    %40 = arith.mulf %37, %39 : vector<8x256xf32>
    %41 = vector.extract_strided_slice %7 {offsets = [0, 16], sizes = [8, 240], strides = [1, 1]} : vector<8x256xf32> to vector<8x240xf32>
    %cst_21 = arith.constant 0.000000e+00 : f32
    %42 = vector.broadcast %cst_21 : f32 to vector<8x16xf32>
    %43 = tpu.concatenate %41, %42 in 1 : vector<8x240xf32>, vector<8x16xf32> -> vector<8x256xf32>
    %44 = vector.extract_strided_slice %7 {offsets = [0, 17], sizes = [8, 239], strides = [1, 1]} : vector<8x256xf32> to vector<8x239xf32>
    %cst_22 = arith.constant 0.000000e+00 : f32
    %45 = vector.broadcast %cst_22 : f32 to vector<8x17xf32>
    %46 = tpu.concatenate %44, %45 in 1 : vector<8x239xf32>, vector<8x17xf32> -> vector<8x256xf32>
    %c0_23 = arith.constant 0 : index
    %c0_24 = arith.constant 0 : index
    %47 = vector.load %arg6[%c0_23, %c0_24] : memref<1x256xf32, #tpu.memory_space<vmem>>, vector<1x256xf32>
    %48 = vector.broadcast %47 : vector<1x256xf32> to vector<8x256xf32>
    %49 = arith.mulf %46, %48 : vector<8x256xf32>
    %50 = tpu.concatenate %13, %16, %22, %28, %7, %34, %40, %43, %49 in 0 : vector<8x256xf32>, vector<8x256xf32>, vector<8x256xf32>, vector<8x256xf32>, vector<8x256xf32>, vector<8x256xf32>, vector<8x256xf32>, vector<8x256xf32>, vector<8x256xf32> -> vector<72x256xf32>
    %c0_25 = arith.constant 0 : index
    %c0_26 = arith.constant 0 : index
    %51 = vector.load %arg4[%c0_25, %c0_26] : memref<8x72xf32, #tpu.memory_space<vmem>>, vector<8x72xf32>
    %cst_27 = arith.constant dense<0.000000e+00> : vector<8x256xf32>
    %52 = tpu.matmul %51, %50, %cst_27 {dimension_numbers = #tpu.dot_dimension_numbers<[1], [0], [0], [1], [0, 0, 1, 1], [], []>} : vector<8x72xf32>, vector<72x256xf32>, vector<8x256xf32> -> vector<8x256xf32>
    %cst_28 = arith.constant 0.000000e+00 : f32
    %53 = vector.broadcast %cst_28 : f32 to vector<8x256xf32>
    %54 = arith.maximumf %52, %53 : vector<8x256xf32>
    %c0_29 = arith.constant 0 : index
    %c0_30 = arith.constant 0 : index
    %c0_31 = arith.constant 0 : index
    %55 = vector.load %arg7[%c0_29, %c0_30, %c0_31] : memref<1x8x256xf32, #tpu.memory_space<vmem>>, vector<1x8x256xf32>
    %56 = vector.shape_cast %55 : vector<1x8x256xf32> to vector<8x256xf32>
    %57 = vector.shape_cast %54 : vector<8x256xf32> to vector<1x8x256xf32>
    tpu.vector_store %arg7[%c0_29, %c0_30, %c0_31], %57 {strides = array<i32>} : memref<1x8x256xf32, #tpu.memory_space<vmem>>, vector<1x8x256xf32>,
    return
  }
  func.func @transform_0(%arg0: i32) -> (i32, i32, i32) {
    %c0_i32 = arith.constant 0 : i32
    %c0_i32_0 = arith.constant 0 : i32
    %c0_i32_1 = arith.constant 0 : i32
    return %arg0, %c0_i32, %c0_i32_0 : i32, i32, i32
  }
  func.func @transform_1(%arg0: i32) -> (i32, i32) {
    %c0_i32 = arith.constant 0 : i32
    %c0_i32_0 = arith.constant 0 : i32
    %c0_i32_1 = arith.constant 0 : i32
    return %c0_i32, %c0_i32_0 : i32, i32
  }
  func.func @transform_2(%arg0: i32) -> (i32, i32) {
    %c0_i32 = arith.constant 0 : i32
    %c0_i32_0 = arith.constant 0 : i32
    %c0_i32_1 = arith.constant 0 : i32
    return %c0_i32, %c0_i32_0 : i32, i32
  }
  func.func @transform_3(%arg0: i32) -> (i32, i32) {
    %c0_i32 = arith.constant 0 : i32
    %c0_i32_0 = arith.constant 0 : i32
    %c0_i32_1 = arith.constant 0 : i32
    return %c0_i32, %c0_i32_0 : i32, i32
  }
  func.func @transform_4(%arg0: i32) -> (i32, i32) {
    %c0_i32 = arith.constant 0 : i32
    %c0_i32_0 = arith.constant 0 : i32
    %c0_i32_1 = arith.constant 0 : i32
    return %c0_i32, %c0_i32_0 : i32, i32
  }
  func.func @transform_5(%arg0: i32) -> (i32, i32) {
    %c0_i32 = arith.constant 0 : i32
    %c0_i32_0 = arith.constant 0 : i32
    %c0_i32_1 = arith.constant 0 : i32
    return %c0_i32, %c0_i32_0 : i32, i32
  }
  func.func @transform_6(%arg0: i32) -> (i32, i32, i32) {
    %c0_i32 = arith.constant 0 : i32
    %c0_i32_0 = arith.constant 0 : i32
    %c0_i32_1 = arith.constant 0 : i32
    return %arg0, %c0_i32, %c0_i32_0 : i32, i32, i32
  }
}

</mosaic_0001>

<llo_original>
// kernel: norm_conv2d_relu.1
$region0: #{norm_conv2d_relu.1}
  #allocation0 [shape = 'u32[]', space=smem, size = 0x4, offset = 0x4, fixed_abs, tag = 'smem constant byte address 0x4 - core index']
  #allocation1 [shape = 'u32[72,128]{1,0:T(1,128)}', space=vmem, size = 0x9000, scoped, tag = 'internal scratch']
  %s0 = inlined_call_operand.vmem [shape: f32[2,8,256], index: 0, kind: input, shape index: {}]
  %s1 = inlined_call_operand.vmem [shape: f32[8,1], index: 1, kind: input, shape index: {}]
  %s2 = inlined_call_operand.vmem [shape: f32[8,1], index: 2, kind: input, shape index: {}]
  %s3 = inlined_call_operand.vmem [shape: f32[8,72], index: 3, kind: input, shape index: {}]
  %s4 = inlined_call_operand.vmem [shape: f32[1,256], index: 4, kind: input, shape index: {}]
  %s5 = inlined_call_operand.vmem [shape: f32[1,256], index: 5, kind: input, shape index: {}]
  %s6 = inlined_call_operand.vmem [shape: f32[2,8,256], index: 6, kind: output, shape index: {}]
  %s7 = sld [smem:[#allocation0]]
  $region57: #{norm_conv2d_relu.1} parent=0
    _
  %s9 = ssub.s32 1, %s7
  %s10 = scalar_select 0, %s9, %s7
  loop: start=0, step=1, limit=4
  $region2: #{norm_conv2d_relu.1} parent=0 // loop_pre_header
    _
  $region3: #{norm_conv2d_relu.1} parent=0 // loop_header
    %s12 = sphi 0, %s16
    %p13 = scmp.ge.s32.totalorder %s12, 4
    %s22 = sphi 0, %s24
    %s25 = sphi 0, %s22
    %s26 = sphi 0, %s25
    %s42 = sphi 0, %s26
    %s46 = sphi 0, %s46
    %s48 = sphi 0, %s46
    %s49 = sphi 0, %s48
    %s63 = sphi 0, %s49
    %s67 = sphi 0, %s67
    %s69 = sphi 0, %s67
    %s70 = sphi 0, %s69
    %s84 = sphi 0, %s70
    %s88 = sphi 0, %s88
    %s90 = sphi 0, %s88
    %s91 = sphi 0, %s90
    %s105 = sphi 0, %s91
    %s109 = sphi 0, %s109
    %s111 = sphi 0, %s109
    %s112 = sphi 0, %s111
    %s126 = sphi 0, %s112
    %s130 = sphi 0, %s130
    %s132 = sphi 0, %s130
    %s133 = sphi 0, %s132
    %s147 = sphi 0, %s133
    %s153 = sphi 0, %s155
    %s156 = sphi 0, %s153
    %s157 = sphi 0, %s156
    %s173 = sphi 0, %s157
  $region4: #{norm_conv2d_relu.1} parent=0 // loop_header_branch
    %15 = sbr.rel (%p13) target = $region8
  $region5: #{norm_conv2d_relu.1} parent=0 // loop_body
    %s17 = ssub.s32 %s12, 1
    %s18 = ssub.s32 %s12, 2
    %s19 = sadd.s32 %s12, 1
    %s20 = ssub.s32 %s12, %s19
    %p21 = scmp.eq.s32.totalorder %s20, 0
    %s23 = sadd.s32 %s22, 1
    %s24 = scalar_select %p21, %s22, %s23
    %p27 = pneg %p21
    %p28 = scmp.eq.s32.totalorder %s12, 1
    %p29 = por %p27, %p28
    %p30 = scmp.ne.s32.totalorder %s22, %s25
    %p31 = scmp.eq.s32.totalorder %s12, 0
    %p32 = por %p30, %p31
    %p33 = scmp.ne.s32.totalorder %s22, %s25
    %p34 = scmp.eq.s32.totalorder %s17, 1
    %p35 = por %p33, %p34
    %p36 = scmp.ne.s32.totalorder %s25, %s26
    %p37 = scmp.eq.s32.totalorder %s17, 0
    %p38 = por %p36, %p37
    %p39 = scmp.ne.s32.totalorder %s25, %s26
    %p40 = scmp.eq.s32.totalorder %s18, 1
    %p41 = por %p39, %p40
    %p43 = scmp.ne.s32.totalorder %s26, %s42
    %p44 = scmp.eq.s32.totalorder %s18, 0
    %p45 = por %p43, %p44
    %s47 = sadd.s32 %s46, 1
    %p50 = scmp.eq.s32.totalorder %s12, 1
    %p51 = scmp.ne.s32.totalorder %s46, %s48
    %p52 = scmp.eq.s32.totalorder %s12, 0
    %p53 = por %p51, %p52
    %p54 = scmp.ne.s32.totalorder %s46, %s48
    %p55 = scmp.eq.s32.totalorder %s17, 1
    %p56 = por %p54, %p55
    %p57 = scmp.ne.s32.totalorder %s48, %s49
    %p58 = scmp.eq.s32.totalorder %s17, 0
    %p59 = por %p57, %p58
    %p60 = scmp.ne.s32.totalorder %s48, %s49
    %p61 = scmp.eq.s32.totalorder %s18, 1
    %p62 = por %p60, %p61
    %p64 = scmp.ne.s32.totalorder %s49, %s63
    %p65 = scmp.eq.s32.totalorder %s18, 0
    %p66 = por %p64, %p65
    %s68 = sadd.s32 %s67, 1
    %p71 = scmp.eq.s32.totalorder %s12, 1
    %p72 = scmp.ne.s32.totalorder %s67, %s69
    %p73 = scmp.eq.s32.totalorder %s12, 0
    %p74 = por %p72, %p73
    %p75 = scmp.ne.s32.totalorder %s67, %s69
    %p76 = scmp.eq.s32.totalorder %s17, 1
    %p77 = por %p75, %p76
    %p78 = scmp.ne.s32.totalorder %s69, %s70
    %p79 = scmp.eq.s32.totalorder %s17, 0
    %p80 = por %p78, %p79
    %p81 = scmp.ne.s32.totalorder %s69, %s70
    %p82 = scmp.eq.s32.totalorder %s18, 1
    %p83 = por %p81, %p82
    %p85 = scmp.ne.s32.totalorder %s70, %s84
    %p86 = scmp.eq.s32.totalorder %s18, 0
    %p87 = por %p85, %p86
    %s89 = sadd.s32 %s88, 1
    %p92 = scmp.eq.s32.totalorder %s12, 1
    %p93 = scmp.ne.s32.totalorder %s88, %s90
    %p94 = scmp.eq.s32.totalorder %s12, 0
    %p95 = por %p93, %p94
    %p96 = scmp.ne.s32.totalorder %s88, %s90
    %p97 = scmp.eq.s32.totalorder %s17, 1
    %p98 = por %p96, %p97
    %p99 = scmp.ne.s32.totalorder %s90, %s91
    %p100 = scmp.eq.s32.totalorder %s17, 0
    %p101 = por %p99, %p100
    %p102 = scmp.ne.s32.totalorder %s90, %s91
    %p103 = scmp.eq.s32.totalorder %s18, 1
    %p104 = por %p102, %p103
    %p106 = scmp.ne.s32.totalorder %s91, %s105
    %p107 = scmp.eq.s32.totalorder %s18, 0
    %p108 = por %p106, %p107
    %s110 = sadd.s32 %s109, 1
    %p113 = scmp.eq.s32.totalorder %s12, 1
    %p114 = scmp.ne.s32.totalorder %s109, %s111
    %p115 = scmp.eq.s32.totalorder %s12, 0
    %p116 = por %p114, %p115
    %p117 = scmp.ne.s32.totalorder %s109, %s111
    %p118 = scmp.eq.s32.totalorder %s17, 1
    %p119 = por %p117, %p118
    %p120 = scmp.ne.s32.totalorder %s111, %s112
    %p121 = scmp.eq.s32.totalorder %s17, 0
    %p122 = por %p120, %p121
    %p123 = scmp.ne.s32.totalorder %s111, %s112
    %p124 = scmp.eq.s32.totalorder %s18, 1
    %p125 = por %p123, %p124
    %p127 = scmp.ne.s32.totalorder %s112, %s126
    %p128 = scmp.eq.s32.totalorder %s18, 0
    %p129 = por %p127, %p128
    %s131 = sadd.s32 %s130, 1
    %p134 = scmp.eq.s32.totalorder %s12, 1
    %p135 = scmp.ne.s32.totalorder %s130, %s132
    %p136 = scmp.eq.s32.totalorder %s12, 0
    %p137 = por %p135, %p136
    %p138 = scmp.ne.s32.totalorder %s130, %s132
    %p139 = scmp.eq.s32.totalorder %s17, 1
    %p140 = por %p138, %p139
    %p141 = scmp.ne.s32.totalorder %s132, %s133
    %p142 = scmp.eq.s32.totalorder %s17, 0
    %p143 = por %p141, %p142
    %p144 = scmp.ne.s32.totalorder %s132, %s133
    %p145 = scmp.eq.s32.totalorder %s18, 1
    %p146 = por %p144, %p145
    %p148 = scmp.ne.s32.totalorder %s133, %s147
    %p149 = scmp.eq.s32.totalorder %s18, 0
    %p150 = por %p148, %p149
    %s151 = ssub.s32 %s12, %s19
    %p152 = scmp.eq.s32.totalorder %s151, 0
    %s154 = sadd.s32 %s153, 1
    %s155 = scalar_select %p152, %s153, %s154
    %p158 = pneg %p152
    %p159 = scmp.eq.s32.totalorder %s12, 1
    %p160 = por %p158, %p159
    %p161 = scmp.ne.s32.totalorder %s153, %s156
    %p162 = scmp.eq.s32.totalorder %s12, 0
    %p163 = por %p161, %p162
    %p164 = scmp.ne.s32.totalorder %s153, %s156
    %p165 = scmp.eq.s32.totalorder %s17, 1
    %p166 = por %p164, %p165
    %p167 = scmp.ne.s32.totalorder %s156, %s157
    %p168 = scmp.eq.s32.totalorder %s17, 0
    %p169 = por %p167, %p168
    %p170 = scmp.ne.s32.totalorder %s156, %s157
    %p171 = scmp.eq.s32.totalorder %s18, 1
    %p172 = por %p170, %p171
    %p174 = scmp.ne.s32.totalorder %s157, %s173
    %p175 = scmp.eq.s32.totalorder %s18, 0
    %p176 = por %p174, %p175
    %p177 = scmp.le.s32.totalorder 1, %s12
    %p178 = scmp.lt.s32.totalorder %s12, 3
    %p179 = pnand %p177, %p178
    %p180 = pneg %p179
    // Predicated region
    $region9: #{norm_conv2d_relu.1} parent=5 // pred_check
      _
    $region10: #{norm_conv2d_relu.1} parent=5 // pred_check_branch
      %182 = sbr.rel (%p179) target = $region12
    $region11: #{norm_conv2d_relu.1} parent=5 // pred_region
      %s183 = ssub.s32 %s12, 1
      // Predicated region
      $region13: #{norm_conv2d_relu.1} parent=11 // pred_check
        %p184 = pneg %p59
      $region14: #{norm_conv2d_relu.1} parent=11 // pred_check_branch
        %186 = sbr.rel (%p184) target = $region16
      $region15: #{norm_conv2d_relu.1} parent=11 // pred_region
        _
      $region16: #{norm_conv2d_relu.1} parent=11 // pred_fallthru
        _
      // Predicated region
      $region17: #{norm_conv2d_relu.1} parent=11 // pred_check
        %p187 = pneg %p80
      $region18: #{norm_conv2d_relu.1} parent=11 // pred_check_branch
        %189 = sbr.rel (%p187) target = $region20
      $region19: #{norm_conv2d_relu.1} parent=11 // pred_region
        _
      $region20: #{norm_conv2d_relu.1} parent=11 // pred_fallthru
        _
      // Predicated region
      $region21: #{norm_conv2d_relu.1} parent=11 // pred_check
        %p190 = pneg %p101
      $region22: #{norm_conv2d_relu.1} parent=11 // pred_check_branch
        %192 = sbr.rel (%p190) target = $region24
      $region23: #{norm_conv2d_relu.1} parent=11 // pred_region
        _
      $region24: #{norm_conv2d_relu.1} parent=11 // pred_fallthru
        _
      // Predicated region
      $region25: #{norm_conv2d_relu.1} parent=11 // pred_check
        %p193 = pneg %p122
      $region26: #{norm_conv2d_relu.1} parent=11 // pred_check_branch
        %195 = sbr.rel (%p193) target = $region28
      $region27: #{norm_conv2d_relu.1} parent=11 // pred_region
        _
      $region28: #{norm_conv2d_relu.1} parent=11 // pred_fallthru
        _
      // Predicated region
      $region29: #{norm_conv2d_relu.1} parent=11 // pred_check
        %p196 = pneg %p143
      $region30: #{norm_conv2d_relu.1} parent=11 // pred_check_branch
        %198 = sbr.rel (%p196) target = $region32
      $region31: #{norm_conv2d_relu.1} parent=11 // pred_region
        _
      $region32: #{norm_conv2d_relu.1} parent=11 // pred_fallthru
        _
    $region12: #{norm_conv2d_relu.1} parent=5 // pred_fallthru
      _
    %p199 = scmp.lt.s32.totalorder %s12, 2
    // Predicated region
    $region33: #{norm_conv2d_relu.1} parent=5 // pred_check
      %p200 = pneg %p199
    $region34: #{norm_conv2d_relu.1} parent=5 // pred_check_branch
      %202 = sbr.rel (%p200) target = $region36
    $region35: #{norm_conv2d_relu.1} parent=5 // pred_region
      // Predicated region
      $region37: #{norm_conv2d_relu.1} parent=35 // pred_check
        %p203 = pneg %p32
      $region38: #{norm_conv2d_relu.1} parent=35 // pred_check_branch
        %205 = sbr.rel (%p203) target = $region40
      $region39: #{norm_conv2d_relu.1} parent=35 // pred_region
        %p206 = scmp.lt.s32.totalorder %s12, 1
        %s207 = scalar_select %p206, %s12, 1
        %s208 = smul.addr %s207, 2
        %s209 = smul.addr %s208, 8
        %s210 = scalar_lea.vmem %s0, %s209
      $region40: #{norm_conv2d_relu.1} parent=35 // pred_fallthru
        _
    $region36: #{norm_conv2d_relu.1} parent=5 // pred_fallthru
      _
    %p211 = scmp.le.s32.totalorder 1, %s12
    %p212 = scmp.lt.s32.totalorder %s12, 3
    %p213 = pnand %p211, %p212
    %p214 = pneg %p213
    // Predicated region
    $region41: #{norm_conv2d_relu.1} parent=5 // pred_check
      _
    $region42: #{norm_conv2d_relu.1} parent=5 // pred_check_branch
      %216 = sbr.rel (%p213) target = $region44
    $region43: #{norm_conv2d_relu.1} parent=5 // pred_region
      %s217 = ssub.s32 %s12, 1
      %p218 = scmp.lt.s32.totalorder %s17, 1
      %s219 = scalar_select %p218, %s17, 1
      %s220 = smul.addr %s219, 2
      %s221 = smul.addr %s220, 8
      %s222 = scalar_lea.vmem %s0, %s221
      %p223 = pneg %p38
      %p224 = pneg %p35
      %p225 = pneg %p59
      %p226 = pneg %p56
      %p227 = pneg %p80
      %p228 = pneg %p77
      %p229 = pneg %p101
      %p230 = pneg %p98
      %p231 = pneg %p122
      %p232 = pneg %p119
      %p233 = pneg %p143
      %p234 = pneg %p140
      %p235 = pneg %p169
      %p236 = pneg %p166
      %p237 = scmp.lt.s32.totalorder %s17, 1
      %s238 = scalar_select %p237, %s17, 1
      %s239 = smul.addr %s238, 2
      %s240 = smul.addr %s239, 8
      %s241 = scalar_lea.vmem %s6, %s240
      %p242 = scmp.lt.s32.totalorder %s17, 1
      %s243 = scalar_select %p242, %s17, 1
      %s244 = smul.addr %s243, 2
      %s245 = smul.addr %s244, 8
      %s246 = scalar_lea.vmem %s0, %s245
      %p247 = scmp.lt.s32.totalorder %s17, 1
      %s248 = scalar_select %p247, %s17, 1
      %s249 = smul.addr %s248, 2
      %s250 = smul.addr %s249, 8
      %s251 = scalar_lea.vmem %s6, %s250
      %v252 = vld [vmem:[%s246] sm:$0xff]
      %v253 = vld [vmem:[%s246 + $0x8] sm:$0xff]
      %v254 = vld [vmem:[%s1] sm:$0xff]
      %256 = vset.pattern.permute.xlu0 0
      %257 = vperm.xlu0 %256, %v254
      %v258 = vpop.permute.xlu0 %257
      %v260 = vmul.f32 %v252, %v258
      %v261 = vmul.f32 %v253, %v258
      %v262 = vld [vmem:[%s2] sm:$0xff]
      %264 = vset.pattern.permute.xlu0 0
      %265 = vperm.xlu0 %264, %v262
      %v266 = vpop.permute.xlu0 %265
      %v268 = vadd.f32 %v260, %v266
      %v269 = vadd.f32 %v261, %v266
      %272 = vrot.lane.b32.xlu0 %v268, 17
      %v273 = vpop.permute.xlu0 %272
      %274 = vrot.lane.b32.xlu0 %v269, 17
      %v275 = vpop.permute.xlu0 %274
      %vm276 = vcmask 138240
      %v277 = vsel %vm276, %v273, %v275
      %v280 = vsel %vm276, 0.0, %v273
      %v281 = vld [vmem:[%s4] sm:$0x3]
      %v283 = vperm.slane %v281, 0
      %v284 = vperm.slane %v281, 1
      %v287 = vmul.f32 %v280, %v283
      %v288 = vmul.f32 %v277, %v284
      %289 = vrot.lane.b32.xlu0 %v268, 16
      %v290 = vpop.permute.xlu0 %289
      %291 = vrot.lane.b32.xlu0 %v269, 16
      %v292 = vpop.permute.xlu0 %291
      %vm293 = vcmask 130048
      %v294 = vsel %vm293, %v290, %v292
      %v297 = vsel %vm293, 0.0, %v290
      %298 = vrot.lane.b32.xlu0 %v268, 15
      %v299 = vpop.permute.xlu0 %298
      %300 = vrot.lane.b32.xlu0 %v269, 15
      %v301 = vpop.permute.xlu0 %300
      %vm302 = vcmask 121856
      %v303 = vsel %vm302, %v299, %v301
      %v306 = vsel %vm302, 0.0, %v299
      %v307 = vld [vmem:[%s5] sm:$0x3]
      %v309 = vperm.slane %v307, 0
      %v310 = vperm.slane %v307, 1
      %v313 = vmul.f32 %v306, %v309
      %v314 = vmul.f32 %v303, %v310
      %315 = vrot.lane.b32.xlu0 %v268, 1
      %v316 = vpop.permute.xlu0 %315
      %317 = vrot.lane.b32.xlu0 %v269, 1
      %v318 = vpop.permute.xlu0 %317
      %vm319 = vcmask 7168
      %v320 = vsel %vm319, %v316, %v318
      %v323 = vsel %vm319, 0.0, %v316
      %v324 = vmul.f32 %v323, %v283
      %v325 = vmul.f32 %v320, %v284
      %326 = vrot.lane.b32.xlu0 %v268, 127
      %v327 = vpop.permute.xlu0 %326
      %328 = vrot.lane.b32.xlu0 %v269, 127
      %v329 = vpop.permute.xlu0 %328
      %vm330 = vcmask 1039360
      %v331 = vsel %vm330, %v327, %v329
      %v334 = vsel %vm330, %v329, 0.0
      %v335 = vmul.f32 %v331, %v309
      %v336 = vmul.f32 %v334, %v310
      %337 = vrot.lane.b32.xlu0 %v268, 113
      %v338 = vpop.permute.xlu0 %337
      %339 = vrot.lane.b32.xlu0 %v269, 113
      %v340 = vpop.permute.xlu0 %339
      %vm341 = vcmask 924672
      %v342 = vsel %vm341, %v338, %v340
      %v345 = vsel %vm341, %v340, 0.0
      %v346 = vmul.f32 %v342, %v283
      %v347 = vmul.f32 %v345, %v284
      %348 = vrot.lane.b32.xlu0 %v268, 112
      %v349 = vpop.permute.xlu0 %348
      %350 = vrot.lane.b32.xlu0 %v269, 112
      %v351 = vpop.permute.xlu0 %350
      %vm352 = vcmask 916480
      %v353 = vsel %vm352, %v349, %v351
      %v356 = vsel %vm352, %v351, 0.0
      %357 = vrot.lane.b32.xlu0 %v268, 111
      %v358 = vpop.permute.xlu0 %357
      %359 = vrot.lane.b32.xlu0 %v269, 111
      %v360 = vpop.permute.xlu0 %359
      %vm361 = vcmask 908288
      %v362 = vsel %vm361, %v358, %v360
      %v365 = vsel %vm361, %v360, 0.0
      %v366 = vmul.f32 %v362, %v309
      %v367 = vmul.f32 %v365, %v310
      %v368 = vld [vmem:[%s3] sm:$0xff]
      %vm369 = vcmask 588800
      %v371 = vsel %vm369, %v368, 0
      %373 = vmatpush.msra.mxu0 0.0
      %374 = vmatpush.msra.mxu0 0.0
      %375 = vmatpush.msra.mxu0 0.0
      %376 = vmatpush.msra.mxu0 0.0
      %377 = vmatpush.msra.mxu0 0.0
      %378 = vmatpush.msra.mxu0 0.0
      %379 = vmatpush.msra.mxu0 0.0
      %380 = vmatpush.msra.mxu0 %v366
      %381 = vmatpush.msra.mxu0 %v353
      %382 = vmatpush.msra.mxu0 %v346
      %383 = vmatpush.msra.mxu0 %v335
      %384 = vmatpush.msra.mxu0 %v268
      %385 = vmatpush.msra.mxu0 %v324
      %386 = vmatpush.msra.mxu0 %v313
      %387 = vmatpush.msra.mxu0 %v297
      %388 = vmatpush.msra.mxu0 %v287
      %389 = vmatmul.f32.gmra.mxu0 %v371
      %v390 = vpop.f32.mrf.mxu0
      %v391 = vadd.f32 0.0, %v390
      %392 = vdwg.mxu0
      %393 = vmatpush.msra.mxu0 0.0
      %394 = vmatpush.msra.mxu0 0.0
      %395 = vmatpush.msra.mxu0 0.0
      %396 = vmatpush.msra.mxu0 0.0
      %397 = vmatpush.msra.mxu0 0.0
      %398 = vmatpush.msra.mxu0 0.0
      %399 = vmatpush.msra.mxu0 0.0
      %400 = vmatpush.msra.mxu0 %v367
      %401 = vmatpush.msra.mxu0 %v356
      %402 = vmatpush.msra.mxu0 %v347
      %403 = vmatpush.msra.mxu0 %v336
      %404 = vmatpush.msra.mxu0 %v269
      %405 = vmatpush.msra.mxu0 %v325
      %406 = vmatpush.msra.mxu0 %v314
      %407 = vmatpush.msra.mxu0 %v294
      %408 = vmatpush.msra.mxu0 %v288
      %409 = vmatmul.f32.gmra.mxu0 %v371
      %v410 = vpop.f32.mrf.mxu0
      %v411 = vadd.f32 0.0, %v410
      %412 = vdwg.mxu0
      %v413 = vmax.f32 %v391, 0.0
      %v414 = vmax.f32 %v411, 0.0
      %415 = vst [vmem:[%s251] sm:$0xff] %v413
      %416 = vst [vmem:[%s251 + $0x8] sm:$0xff] %v414
      %p417 = scmp.lt.s32.totalorder %s17, 1
      %s418 = scalar_select %p417, %s17, 1
      %s419 = smul.addr %s418, 2
      %s420 = smul.addr %s419, 8
      %s421 = scalar_lea.vmem %s6, %s420
      // Predicated region
      $region45: #{norm_conv2d_relu.1} parent=43 // pred_check
        %p422 = pneg %p166
      $region46: #{norm_conv2d_relu.1} parent=43 // pred_check_branch
        %424 = sbr.rel (%p422) target = $region48
      $region47: #{norm_conv2d_relu.1} parent=43 // pred_region
        _
      $region48: #{norm_conv2d_relu.1} parent=43 // pred_fallthru
        _
    $region44: #{norm_conv2d_relu.1} parent=5 // pred_fallthru
      _
    %p425 = scmp.le.s32.totalorder 2, %s12
    // Predicated region
    $region49: #{norm_conv2d_relu.1} parent=5 // pred_check
      %p426 = pneg %p425
    $region50: #{norm_conv2d_relu.1} parent=5 // pred_check_branch
      %428 = sbr.rel (%p426) target = $region52
    $region51: #{norm_conv2d_relu.1} parent=5 // pred_region
      %s429 = ssub.s32 %s12, 2
      // Predicated region
      $region53: #{norm_conv2d_relu.1} parent=51 // pred_check
        %p430 = pneg %p172
      $region54: #{norm_conv2d_relu.1} parent=51 // pred_check_branch
        %432 = sbr.rel (%p430) target = $region56
      $region55: #{norm_conv2d_relu.1} parent=51 // pred_region
        %p433 = scmp.lt.s32.totalorder %s18, 1
        %s434 = scalar_select %p433, %s18, 1
        %s435 = smul.addr %s434, 2
        %s436 = smul.addr %s435, 8
        %s437 = scalar_lea.vmem %s6, %s436
      $region56: #{norm_conv2d_relu.1} parent=51 // pred_fallthru
        _
    $region52: #{norm_conv2d_relu.1} parent=5 // pred_fallthru
      _
  $region6: #{norm_conv2d_relu.1} parent=0 // loop_footer
    %s16 = sadd.s32 1, %s12
  $region7: #{norm_conv2d_relu.1} parent=0 // loop_footer_branch
    %11 = sbr.rel target = $region3
  $region8: #{norm_conv2d_relu.1} parent=0 // loop_exit
    _

</llo_original>
